<compile_context>
chip_gen: v7x
topology: tpu7x:2x2x1
jax: 0.10.0
libtpu: 0.0.40
codegen_flags: <defaults>
</compile_context>

<pallas_src>
import jax
import jax.numpy as jnp
from jax.experimental import pallas as pl
from jax.experimental.pallas import tpu as pltpu


def _round_up(x, m):
    return ((x + m - 1) // m) * m


def _complex_matmul_kernel(xr_ref, xi_ref, wr_ref, ws_ref, wd_ref,
                           br_ref, bi_ref, or_ref, oi_ref,
                           acc_r_ref, acc_i_ref):
    k = pl.program_id(2)

    @pl.when(k == 0)
    def _():
        acc_r_ref[...] = jnp.zeros_like(acc_r_ref)
        acc_i_ref[...] = jnp.zeros_like(acc_i_ref)

    xr = xr_ref[...]
    xi = xi_ref[...]
    # Gauss 3-matmul complex multiply; weight combinations precomputed in the
    # wrapper. The extra adds land on the VPU slot (slack), matmuls on the MXU.
    p1 = jnp.dot(xr + xi, wr_ref[...], preferred_element_type=jnp.float32)
    p2 = jnp.dot(xi, ws_ref[...], preferred_element_type=jnp.float32)
    p3 = jnp.dot(xr, wd_ref[...], preferred_element_type=jnp.float32)
    acc_r_ref[...] += p1 - p2
    acc_i_ref[...] += p1 + p3

    @pl.when(k == pl.num_programs(2) - 1)
    def _():
        # Combined biases added exactly once per output tile (finalize only).
        or_ref[...] = acc_r_ref[...] + br_ref[...]
        oi_ref[...] = acc_i_ref[...] + bi_ref[...]


def complex_conv1d(x, w_r, b_r, w_i, b_i, *, stride=1, padding=0, dilation=1):
    """Complex Conv1d.

    x   : (B, C_in, L) complex64
    w_* : (C_out, C_in, K) float32   (PyTorch Conv1d weight layout)
    b_* : (C_out,) float32
    returns (B, C_out, L_out) complex64
    """
    B, C_in, L = x.shape
    C_out, C_in_w, K = w_r.shape
    assert C_in_w == C_in, "groups != 1 not supported"
    # TODO(synk): grouped convolutions (groups > 1) are not implemented.

    L_out = (L + 2 * padding - dilation * (K - 1) - 1) // stride + 1

    # Split complex into real/imag f32 planes outside the kernel.
    xr = jnp.real(x).astype(jnp.float32)
    xi = jnp.imag(x).astype(jnp.float32)
    if padding > 0:
        cfg = ((0, 0), (0, 0), (padding, padding))
        xr = jnp.pad(xr, cfg)
        xi = jnp.pad(xi, cfg)

    def im2col(a):
        cols = [a[:, :, k * dilation: k * dilation + stride * (L_out - 1) + 1: stride]
                for k in range(K)]
        p = jnp.stack(cols, axis=2)            # (B, C_in, K, L_out)
        p = jnp.transpose(p, (0, 3, 1, 2))     # (B, L_out, C_in, K)
        return p.reshape(B * L_out, C_in * K)

    pr = im2col(xr)
    pi = im2col(xi)

    # Weights -> (C_in*K, C_out) matching the patch layout; precombine the
    # Gauss weight terms and the output biases once (weight-sized work).
    wr2 = jnp.transpose(w_r.reshape(C_out, C_in * K)).astype(jnp.float32)
    wi2 = jnp.transpose(w_i.reshape(C_out, C_in * K)).astype(jnp.float32)
    w_sum = wr2 + wi2                          # W_r + W_i
    w_diff = wi2 - wr2                         # W_i - W_r
    b_real = (b_r - b_i).astype(jnp.float32)
    b_imag = (b_r + b_i).astype(jnp.float32)

    M, Kd, N = B * L_out, C_in * K, C_out

    # Lane-dense, VMEM-budgeted tiles (safe for v7x's smaller VMEM too).
    TM = min(256, _round_up(M, 8))
    TK = min(512, _round_up(Kd, 128))
    TN = min(256, _round_up(N, 128))
    M_p = _round_up(M, TM)
    K_p = _round_up(Kd, TK)
    N_p = _round_up(N, TN)

    pr = jnp.pad(pr, ((0, M_p - M), (0, K_p - Kd)))
    pi = jnp.pad(pi, ((0, M_p - M), (0, K_p - Kd)))
    wr2 = jnp.pad(wr2, ((0, K_p - Kd), (0, N_p - N)))
    w_sum = jnp.pad(w_sum, ((0, K_p - Kd), (0, N_p - N)))
    w_diff = jnp.pad(w_diff, ((0, K_p - Kd), (0, N_p - N)))
    b_real = jnp.pad(b_real, (0, N_p - N)).reshape(1, N_p)
    b_imag = jnp.pad(b_imag, (0, N_p - N)).reshape(1, N_p)

    grid = (M_p // TM, N_p // TN, K_p // TK)

    x_spec = pl.BlockSpec((TM, TK), lambda i, j, k: (i, k))
    w_spec = pl.BlockSpec((TK, TN), lambda i, j, k: (k, j))
    b_spec = pl.BlockSpec((1, TN), lambda i, j, k: (0, j))
    o_spec = pl.BlockSpec((TM, TN), lambda i, j, k: (i, j))

    out_r, out_i = pl.pallas_call(
        _complex_matmul_kernel,
        out_shape=(
            jax.ShapeDtypeStruct((M_p, N_p), jnp.float32),
            jax.ShapeDtypeStruct((M_p, N_p), jnp.float32),
        ),
        grid_spec=pltpu.PrefetchScalarGridSpec(
            num_scalar_prefetch=0,
            grid=grid,
            in_specs=[x_spec, x_spec, w_spec, w_spec, w_spec, b_spec, b_spec],
            out_specs=[o_spec, o_spec],
            scratch_shapes=[pltpu.VMEM((TM, TN), jnp.float32),
                            pltpu.VMEM((TM, TN), jnp.float32)],
        ),
        compiler_params=pltpu.CompilerParams(
            dimension_semantics=("parallel", "parallel", "arbitrary"),
            vmem_limit_bytes=32 * 1024 * 1024,
        ),
    )(pr, pi, wr2, w_sum, w_diff, b_real, b_imag)

    out_r = out_r[:M, :N].reshape(B, L_out, C_out)
    out_i = out_i[:M, :N].reshape(B, L_out, C_out)
    out_r = jnp.transpose(out_r, (0, 2, 1))    # (B, C_out, L_out)
    out_i = jnp.transpose(out_i, (0, 2, 1))
    return jax.lax.complex(out_r, out_i)       # complex64


if __name__ == "__main__":
    key = jax.random.PRNGKey(0)
    k1, k2, k3, k4, k5, k6 = jax.random.split(key, 6)

    batch, in_channels, out_channels, length, ksize = 2, 4, 8, 16, 3

    # PyTorch-like uniform init: U(-1/sqrt(C_in*K), 1/sqrt(C_in*K)).
    bound = 1.0 / jnp.sqrt(jnp.float32(in_channels * ksize))
    w_r = jax.random.uniform(k1, (out_channels, in_channels, ksize),
                             jnp.float32, -bound, bound)
    b_r = jax.random.uniform(k2, (out_channels,), jnp.float32, -bound, bound)
    w_i = jax.random.uniform(k3, (out_channels, in_channels, ksize),
                             jnp.float32, -bound, bound)
    b_i = jax.random.uniform(k4, (out_channels,), jnp.float32, -bound, bound)

    x_real = jax.random.normal(k5, (batch, in_channels, length), jnp.float32)
    x_imag = jax.random.normal(k6, (batch, in_channels, length), jnp.float32)
    x = jax.lax.complex(x_real, x_imag)        # complex64

    out = complex_conv1d(x, w_r, b_r, w_i, b_i)
    out = jax.block_until_ready(out)

    # Pure-JAX reference: four real Conv1d's, combined as in the PyTorch module.
    def conv1d(a, w, b):
        y = jax.lax.conv_general_dilated(
            a, w, window_strides=(1,), padding=((0, 0),),
            dimension_numbers=("NCH", "OIH", "NCH"))
        return y + b[None, :, None]

    fwd_rr = conv1d(x_real, w_r, b_r)
    fwd_ri = conv1d(x_imag, w_r, b_r)
    fwd_ir = conv1d(x_real, w_i, b_i)
    fwd_ii = conv1d(x_imag, w_i, b_i)
    ref = jax.lax.complex(fwd_rr - fwd_ii, fwd_ri + fwd_ir)

    l_out = length - ksize + 1
    assert out.shape == (batch, out_channels, l_out), out.shape
    assert out.dtype == jnp.complex64, out.dtype
    assert jnp.allclose(out, ref, atol=1e-4, rtol=1e-4)
    print("KERNEL_OK")
</pallas_src>

<mosaic_0001>
module attributes {stable_mosaic.version = 11 : i64} {
  func.func @_complex_matmul_kernel(%arg0: i32, %arg1: i32, %arg2: i32, %arg3: memref<32x128xf32, #tpu.memory_space<vmem>>, %arg4: memref<32x128xf32, #tpu.memory_space<vmem>>, %arg5: memref<128x128xf32, #tpu.memory_space<vmem>>, %arg6: memref<128x128xf32, #tpu.memory_space<vmem>>, %arg7: memref<128x128xf32, #tpu.memory_space<vmem>>, %arg8: memref<1x128xf32, #tpu.memory_space<vmem>>, %arg9: memref<1x128xf32, #tpu.memory_space<vmem>>, %arg10: memref<32x128xf32, #tpu.memory_space<vmem>>, %arg11: memref<32x128xf32, #tpu.memory_space<vmem>>, %arg12: memref<32x128xf32, #tpu.memory_space<vmem>>, %arg13: memref<32x128xf32, #tpu.memory_space<vmem>>) attributes {dimension_semantics = [#tpu.dimension_semantics<parallel>, #tpu.dimension_semantics<parallel>, #tpu.dimension_semantics<arbitrary>], iteration_bounds = array<i64: 1, 1, 1>, scalar_prefetch = 0 : i64, scratch_operands = 2 : i64, tpu.core_type = #tpu.core_type<tc>, window_params = [{transform_indices = @transform_0, window_bounds = array<i64: 32, 128>}, {transform_indices = @transform_1, window_bounds = array<i64: 32, 128>}, {transform_indices = @transform_2, window_bounds = array<i64: 128, 128>}, {transform_indices = @transform_3, window_bounds = array<i64: 128, 128>}, {transform_indices = @transform_4, window_bounds = array<i64: 128, 128>}, {transform_indices = @transform_5, window_bounds = array<i64: 1, 128>}, {transform_indices = @transform_6, window_bounds = array<i64: 1, 128>}, {transform_indices = @transform_7, window_bounds = array<i64: 32, 128>}, {transform_indices = @transform_8, window_bounds = array<i64: 32, 128>}]} {
    %c0_i32 = arith.constant 0 : i32
    %0 = arith.cmpi eq, %arg2, %c0_i32 : i32
    %1 = arith.extui %0 : i1 to i32
    %c0_i32_0 = arith.constant 0 : i32
    %2 = arith.cmpi ne, %1, %c0_i32_0 : i32
    scf.if %2 {
      %cst_22 = arith.constant 0.000000e+00 : f32
      %23 = vector.broadcast %cst_22 : f32 to vector<32x128xf32>
      %c0_23 = arith.constant 0 : index
      %c0_24 = arith.constant 0 : index
      %24 = vector.load %arg12[%c0_23, %c0_24] : memref<32x128xf32, #tpu.memory_space<vmem>>, vector<32x128xf32>
      tpu.vector_store %arg12[%c0_23, %c0_24], %23 {strides = array<i32>} : memref<32x128xf32, #tpu.memory_space<vmem>>, vector<32x128xf32>,
      %cst_25 = arith.constant 0.000000e+00 : f32
      %25 = vector.broadcast %cst_25 : f32 to vector<32x128xf32>
      %c0_26 = arith.constant 0 : index
      %c0_27 = arith.constant 0 : index
      %26 = vector.load %arg13[%c0_26, %c0_27] : memref<32x128xf32, #tpu.memory_space<vmem>>, vector<32x128xf32>
      tpu.vector_store %arg13[%c0_26, %c0_27], %25 {strides = array<i32>} : memref<32x128xf32, #tpu.memory_space<vmem>>, vector<32x128xf32>,
    } else {
    }
    %c0 = arith.constant 0 : index
    %c0_1 = arith.constant 0 : index
    %3 = vector.load %arg3[%c0, %c0_1] : memref<32x128xf32, #tpu.memory_space<vmem>>, vector<32x128xf32>
    %c0_2 = arith.constant 0 : index
    %c0_3 = arith.constant 0 : index
    %4 = vector.load %arg4[%c0_2, %c0_3] : memref<32x128xf32, #tpu.memory_space<vmem>>, vector<32x128xf32>
    %5 = arith.addf %3, %4 : vector<32x128xf32>
    %c0_4 = arith.constant 0 : index
    %c0_5 = arith.constant 0 : index
    %6 = vector.load %arg5[%c0_4, %c0_5] : memref<128x128xf32, #tpu.memory_space<vmem>>, vector<128x128xf32>
    %cst = arith.constant dense<0.000000e+00> : vector<32x128xf32>
    %7 = tpu.matmul %5, %6, %cst {dimension_numbers = #tpu.dot_dimension_numbers<[1], [0], [0], [1], [0, 0, 1, 1], [], []>} : vector<32x128xf32>, vector<128x128xf32>, vector<32x128xf32> -> vector<32x128xf32>
    %c0_6 = arith.constant 0 : index
    %c0_7 = arith.constant 0 : index
    %8 = vector.load %arg6[%c0_6, %c0_7] : memref<128x128xf32, #tpu.memory_space<vmem>>, vector<128x128xf32>
    %cst_8 = arith.constant dense<0.000000e+00> : vector<32x128xf32>
    %9 = tpu.matmul %4, %8, %cst_8 {dimension_numbers = #tpu.dot_dimension_numbers<[1], [0], [0], [1], [0, 0, 1, 1], [], []>} : vector<32x128xf32>, vector<128x128xf32>, vector<32x128xf32> -> vector<32x128xf32>
    %c0_9 = arith.constant 0 : index
    %c0_10 = arith.constant 0 : index
    %10 = vector.load %arg7[%c0_9, %c0_10] : memref<128x128xf32, #tpu.memory_space<vmem>>, vector<128x128xf32>
    %cst_11 = arith.constant dense<0.000000e+00> : vector<32x128xf32>
    %11 = tpu.matmul %3, %10, %cst_11 {dimension_numbers = #tpu.dot_dimension_numbers<[1], [0], [0], [1], [0, 0, 1, 1], [], []>} : vector<32x128xf32>, vector<128x128xf32>, vector<32x128xf32> -> vector<32x128xf32>
    %c0_12 = arith.constant 0 : index
    %c0_13 = arith.constant 0 : index
    %12 = vector.load %arg12[%c0_12, %c0_13] : memref<32x128xf32, #tpu.memory_space<vmem>>, vector<32x128xf32>
    %13 = arith.subf %7, %9 : vector<32x128xf32>
    %14 = arith.addf %12, %13 : vector<32x128xf32>
    %c0_14 = arith.constant 0 : index
    %c0_15 = arith.constant 0 : index
    %15 = vector.load %arg12[%c0_14, %c0_15] : memref<32x128xf32, #tpu.memory_space<vmem>>, vector<32x128xf32>
    tpu.vector_store %arg12[%c0_14, %c0_15], %14 {strides = array<i32>} : memref<32x128xf32, #tpu.memory_space<vmem>>, vector<32x128xf32>,
    %c0_16 = arith.constant 0 : index
    %c0_17 = arith.constant 0 : index
    %16 = vector.load %arg13[%c0_16, %c0_17] : memref<32x128xf32, #tpu.memory_space<vmem>>, vector<32x128xf32>
    %17 = arith.addf %7, %11 : vector<32x128xf32>
    %18 = arith.addf %16, %17 : vector<32x128xf32>
    %c0_18 = arith.constant 0 : index
    %c0_19 = arith.constant 0 : index
    %19 = vector.load %arg13[%c0_18, %c0_19] : memref<32x128xf32, #tpu.memory_space<vmem>>, vector<32x128xf32>
    tpu.vector_store %arg13[%c0_18, %c0_19], %18 {strides = array<i32>} : memref<32x128xf32, #tpu.memory_space<vmem>>, vector<32x128xf32>,
    %c0_i32_20 = arith.constant 0 : i32
    %20 = arith.cmpi eq, %arg2, %c0_i32_20 : i32
    %21 = arith.extui %20 : i1 to i32
    %c0_i32_21 = arith.constant 0 : i32
    %22 = arith.cmpi ne, %21, %c0_i32_21 : i32
    scf.if %22 {
      %c0_22 = arith.constant 0 : index
      %c0_23 = arith.constant 0 : index
      %23 = vector.load %arg12[%c0_22, %c0_23] : memref<32x128xf32, #tpu.memory_space<vmem>>, vector<32x128xf32>
      %c0_24 = arith.constant 0 : index
      %c0_25 = arith.constant 0 : index
      %24 = vector.load %arg8[%c0_24, %c0_25] : memref<1x128xf32, #tpu.memory_space<vmem>>, vector<1x128xf32>
      %25 = vector.broadcast %24 : vector<1x128xf32> to vector<32x128xf32>
      %26 = arith.addf %23, %25 : vector<32x128xf32>
      %c0_26 = arith.constant 0 : index
      %c0_27 = arith.constant 0 : index
      %27 = vector.load %arg10[%c0_26, %c0_27] : memref<32x128xf32, #tpu.memory_space<vmem>>, vector<32x128xf32>
      tpu.vector_store %arg10[%c0_26, %c0_27], %26 {strides = array<i32>} : memref<32x128xf32, #tpu.memory_space<vmem>>, vector<32x128xf32>,
      %c0_28 = arith.constant 0 : index
      %c0_29 = arith.constant 0 : index
      %28 = vector.load %arg13[%c0_28, %c0_29] : memref<32x128xf32, #tpu.memory_space<vmem>>, vector<32x128xf32>
      %c0_30 = arith.constant 0 : index
      %c0_31 = arith.constant 0 : index
      %29 = vector.load %arg9[%c0_30, %c0_31] : memref<1x128xf32, #tpu.memory_space<vmem>>, vector<1x128xf32>
      %30 = vector.broadcast %29 : vector<1x128xf32> to vector<32x128xf32>
      %31 = arith.addf %28, %30 : vector<32x128xf32>
      %c0_32 = arith.constant 0 : index
      %c0_33 = arith.constant 0 : index
      %32 = vector.load %arg11[%c0_32, %c0_33] : memref<32x128xf32, #tpu.memory_space<vmem>>, vector<32x128xf32>
      tpu.vector_store %arg11[%c0_32, %c0_33], %31 {strides = array<i32>} : memref<32x128xf32, #tpu.memory_space<vmem>>, vector<32x128xf32>,
    } else {
    }
    return
  }
  func.func @transform_0(%arg0: i32, %arg1: i32, %arg2: i32) -> (i32, i32) {
    %c0_i32 = arith.constant 0 : i32
    return %arg0, %arg2 : i32, i32
  }
  func.func @transform_1(%arg0: i32, %arg1: i32, %arg2: i32) -> (i32, i32) {
    %c0_i32 = arith.constant 0 : i32
    return %arg0, %arg2 : i32, i32
  }
  func.func @transform_2(%arg0: i32, %arg1: i32, %arg2: i32) -> (i32, i32) {
    %c0_i32 = arith.constant 0 : i32
    return %arg2, %arg1 : i32, i32
  }
  func.func @transform_3(%arg0: i32, %arg1: i32, %arg2: i32) -> (i32, i32) {
    %c0_i32 = arith.constant 0 : i32
    return %arg2, %arg1 : i32, i32
  }
  func.func @transform_4(%arg0: i32, %arg1: i32, %arg2: i32) -> (i32, i32) {
    %c0_i32 = arith.constant 0 : i32
    return %arg2, %arg1 : i32, i32
  }
  func.func @transform_5(%arg0: i32, %arg1: i32, %arg2: i32) -> (i32, i32) {
    %c0_i32 = arith.constant 0 : i32
    %c0_i32_0 = arith.constant 0 : i32
    return %c0_i32, %arg1 : i32, i32
  }
  func.func @transform_6(%arg0: i32, %arg1: i32, %arg2: i32) -> (i32, i32) {
    %c0_i32 = arith.constant 0 : i32
    %c0_i32_0 = arith.constant 0 : i32
    return %c0_i32, %arg1 : i32, i32
  }
  func.func @transform_7(%arg0: i32, %arg1: i32, %arg2: i32) -> (i32, i32) {
    %c0_i32 = arith.constant 0 : i32
    return %arg0, %arg1 : i32, i32
  }
  func.func @transform_8(%arg0: i32, %arg1: i32, %arg2: i32) -> (i32, i32) {
    %c0_i32 = arith.constant 0 : i32
    return %arg0, %arg1 : i32, i32
  }
}

</mosaic_0001>

<llo_original>
// kernel: tpu_custom_call.1
$region0: #{tpu_custom_call.1}
  #allocation0 [shape = 'u32[]', space=smem, size = 0x4, offset = 0x4, fixed_abs, tag = 'smem constant byte address 0x4 - core index']
  #allocation1 [shape = 'u32[144,128]{1,0:T(1,128)}', space=vmem, size = 0x12000, scoped, tag = 'internal scratch']
  #allocation2 [shape = 'f32[32,128]{1,0:T(8,128)}', space=vmem, size = 0x4000, scoped, tag = 'scratch operand']
  #allocation3 [shape = 'f32[32,128]{1,0:T(8,128)}', space=vmem, size = 0x4000, scoped, tag = 'scratch operand']
  %s0 = inlined_call_operand.hbm [shape: f32[32,128], index: 0, kind: input, shape index: {}]
  %s1 = inlined_call_operand.hbm [shape: f32[32,128], index: 1, kind: input, shape index: {}]
  %s2 = inlined_call_operand.hbm [shape: f32[128,128], index: 2, kind: input, shape index: {}]
  %s3 = inlined_call_operand.hbm [shape: f32[128,128], index: 3, kind: input, shape index: {}]
  %s4 = inlined_call_operand.hbm [shape: f32[128,128], index: 4, kind: input, shape index: {}]
  %s5 = inlined_call_operand.vmem [shape: f32[1,128], index: 5, kind: input, shape index: {}]
  %s6 = inlined_call_operand.vmem [shape: f32[1,128], index: 6, kind: input, shape index: {}]
  %s7 = inlined_call_operand.hbm [shape: f32[32,128], index: 7, kind: output, shape index: {0}]
  %s8 = inlined_call_operand.hbm [shape: f32[32,128], index: 8, kind: output, shape index: {1}]
  %9 = xla_tuple %s7, %s8
  %s10 = sld [smem:[#allocation0]]
  $region74: #{tpu_custom_call.1} parent=0
    _
  %s12 = ssub.s32 1, %s10
  %s13 = scalar_select 0, %s12, %s10
  $region1: #{tpu_custom_call.1} parent=0
    #allocation4 [shape = 'u8[16384]{0}', space=vmem, size = 0x4000, scoped, tag = 'input window, operand 0, single buffered']
    #allocation5 [shape = 's32[1]{0}', space=sflag, size = 0x4, scoped, tag = 'scoped memory for tpu_custom_call.1']
    #allocation6 [shape = 's32[1]{0}', space=sflag, size = 0x4, scoped, tag = 'scoped memory for tpu_custom_call.1']
    #allocation7 [shape = 'u8[16384]{0}', space=vmem, size = 0x4000, scoped, tag = 'input window, operand 1, single buffered']
    #allocation8 [shape = 's32[1]{0}', space=sflag, size = 0x4, scoped, tag = 'scoped memory for tpu_custom_call.1']
    #allocation9 [shape = 'u8[65536]{0}', space=vmem, size = 0x10000, scoped, tag = 'input window, operand 2, single buffered']
    #allocation10 [shape = 'u8[65536]{0}', space=vmem, size = 0x10000, scoped, tag = 'input window, operand 3, single buffered']
    #allocation11 [shape = 's32[1]{0}', space=sflag, size = 0x4, scoped, tag = 'scoped memory for tpu_custom_call.1']
    #allocation12 [shape = 'u8[65536]{0}', space=vmem, size = 0x10000, scoped, tag = 'input window, operand 4, single buffered']
    #allocation13 [shape = 'u8[16384]{0}', space=vmem, size = 0x4000, scoped, tag = 'output window, operand 0, single buffered']
    #allocation14 [shape = 'u8[16384]{0}', space=vmem, size = 0x4000, scoped, tag = 'output window, operand 1, single buffered']
    #allocation15 [shape = 's32[1]{0}', space=sflag, size = 0x4, scoped, tag = 'scoped memory for tpu_custom_call.1']
    %14 = vsyncpa [#allocation5], 0
    %15 = vsyncpa [#allocation8], 0
    %16 = vsyncpa [#allocation11], 0
    %17 = vsyncpa [#allocation6], 0
    %18 = vsyncpa [#allocation15], 0
    // Predicated region
    $region2: #{tpu_custom_call.1} parent=1 // pred_check
      _
    $region3: #{tpu_custom_call.1} parent=1 // pred_check_branch
      %20 = sbr.rel (0) target = $region5
    $region4: #{tpu_custom_call.1} parent=1 // pred_region
      %s22 = ssub.s32 512, 512
      %23 = vsyncadd [#allocation5], %s22
      %s24 = sshll.u32 [#allocation4], 4
      %s25 = int_to_ptr.vmem [resolvable:$true] %s24
      %30 = dma.hbm_to_vmem [thread:$0]  %s0, 512, %s25, [#allocation5], 128, 128, 8
    $region5: #{tpu_custom_call.1} parent=1 // pred_fallthru
      _
    // Predicated region
    $region6: #{tpu_custom_call.1} parent=1 // pred_check
      _
    $region7: #{tpu_custom_call.1} parent=1 // pred_check_branch
      %32 = sbr.rel (0) target = $region9
    $region8: #{tpu_custom_call.1} parent=1 // pred_region
      %s34 = ssub.s32 512, 512
      %35 = vsyncadd [#allocation8], %s34
      %s36 = sshll.u32 [#allocation7], 4
      %s37 = int_to_ptr.vmem [resolvable:$true] %s36
      %42 = dma.hbm_to_vmem [thread:$0]  %s1, 512, %s37, [#allocation8], 128, 128, 8
    $region9: #{tpu_custom_call.1} parent=1 // pred_fallthru
      _
    // Predicated region
    $region10: #{tpu_custom_call.1} parent=1 // pred_check
      _
    $region11: #{tpu_custom_call.1} parent=1 // pred_check_branch
      %44 = sbr.rel (0) target = $region13
    $region12: #{tpu_custom_call.1} parent=1 // pred_region
      %s46 = ssub.s32 2048, 2048
      %47 = vsyncadd [#allocation8], %s46
      %s48 = sshll.u32 [#allocation9], 4
      %s49 = int_to_ptr.vmem [resolvable:$true] %s48
      %54 = dma.hbm_to_vmem [thread:$0]  %s2, 2048, %s49, [#allocation8], 128, 128, 8
    $region13: #{tpu_custom_call.1} parent=1 // pred_fallthru
      _
    // Predicated region
    $region14: #{tpu_custom_call.1} parent=1 // pred_check
      _
    $region15: #{tpu_custom_call.1} parent=1 // pred_check_branch
      %56 = sbr.rel (0) target = $region17
    $region16: #{tpu_custom_call.1} parent=1 // pred_region
      %s58 = ssub.s32 2048, 2048
      %59 = vsyncadd [#allocation11], %s58
      %s60 = sshll.u32 [#allocation10], 4
      %s61 = int_to_ptr.vmem [resolvable:$true] %s60
      %66 = dma.hbm_to_vmem [thread:$0]  %s3, 2048, %s61, [#allocation11], 128, 128, 8
    $region17: #{tpu_custom_call.1} parent=1 // pred_fallthru
      _
    // Predicated region
    $region18: #{tpu_custom_call.1} parent=1 // pred_check
      _
    $region19: #{tpu_custom_call.1} parent=1 // pred_check_branch
      %68 = sbr.rel (0) target = $region21
    $region20: #{tpu_custom_call.1} parent=1 // pred_region
      %s70 = ssub.s32 2048, 2048
      %71 = vsyncadd [#allocation11], %s70
      %s72 = sshll.u32 [#allocation12], 4
      %s73 = int_to_ptr.vmem [resolvable:$true] %s72
      %78 = dma.hbm_to_vmem [thread:$0]  %s4, 2048, %s73, [#allocation11], 128, 128, 8
    $region21: #{tpu_custom_call.1} parent=1 // pred_fallthru
      _
    // Predicated region
    $region22: #{tpu_custom_call.1} parent=1 // pred_check
      _
    $region23: #{tpu_custom_call.1} parent=1 // pred_check_branch
      %80 = sbr.rel (0) target = $region25
    $region24: #{tpu_custom_call.1} parent=1 // pred_region
      _
    $region25: #{tpu_custom_call.1} parent=1 // pred_fallthru
      _
    // Predicated region
    $region26: #{tpu_custom_call.1} parent=1 // pred_check
      _
    $region27: #{tpu_custom_call.1} parent=1 // pred_check_branch
      %82 = sbr.rel (0) target = $region29
    $region28: #{tpu_custom_call.1} parent=1 // pred_region
      _
    $region29: #{tpu_custom_call.1} parent=1 // pred_fallthru
      _
    // Predicated region
    $region30: #{tpu_custom_call.1} parent=1 // pred_check
      _
    $region31: #{tpu_custom_call.1} parent=1 // pred_check_branch
      %84 = sbr.rel (0) target = $region33
    $region32: #{tpu_custom_call.1} parent=1 // pred_region
      %85 = dma.done [#allocation5], 512
    $region33: #{tpu_custom_call.1} parent=1 // pred_fallthru
      _
    // Predicated region
    $region34: #{tpu_custom_call.1} parent=1 // pred_check
      _
    $region35: #{tpu_custom_call.1} parent=1 // pred_check_branch
      %87 = sbr.rel (0) target = $region37
    $region36: #{tpu_custom_call.1} parent=1 // pred_region
      %88 = dma.done [#allocation8], 512
    $region37: #{tpu_custom_call.1} parent=1 // pred_fallthru
      _
    // Predicated region
    $region38: #{tpu_custom_call.1} parent=1 // pred_check
      _
    $region39: #{tpu_custom_call.1} parent=1 // pred_check_branch
      %90 = sbr.rel (0) target = $region41
    $region40: #{tpu_custom_call.1} parent=1 // pred_region
      %91 = dma.done [#allocation8], 2048
    $region41: #{tpu_custom_call.1} parent=1 // pred_fallthru
      _
    // Predicated region
    $region42: #{tpu_custom_call.1} parent=1 // pred_check
      _
    $region43: #{tpu_custom_call.1} parent=1 // pred_check_branch
      %93 = sbr.rel (0) target = $region45
    $region44: #{tpu_custom_call.1} parent=1 // pred_region
      %94 = dma.done [#allocation11], 2048
    $region45: #{tpu_custom_call.1} parent=1 // pred_fallthru
      _
    // Predicated region
    $region46: #{tpu_custom_call.1} parent=1 // pred_check
      _
    $region47: #{tpu_custom_call.1} parent=1 // pred_check_branch
      %96 = sbr.rel (0) target = $region49
    $region48: #{tpu_custom_call.1} parent=1 // pred_region
      %97 = dma.done [#allocation11], 2048
    $region49: #{tpu_custom_call.1} parent=1 // pred_fallthru
      _
    %p98 = scmp.eq.s32.totalorder 0, 0
    // Predicated region
    $region50: #{tpu_custom_call.1} parent=1 // pred_check
      %p99 = pneg %p98
    $region51: #{tpu_custom_call.1} parent=1 // pred_check_branch
      %101 = sbr.rel (%p99) target = $region53
    $region52: #{tpu_custom_call.1} parent=1 // pred_region
      %102 = vst [vmem:[#allocation2] sm:$0xff] 0.0
      %103 = vst [vmem:[#allocation2 + $0x8] sm:$0xff] 0.0
      %104 = vst [vmem:[#allocation2 + $0x10] sm:$0xff] 0.0
      %105 = vst [vmem:[#allocation2 + $0x18] sm:$0xff] 0.0
      %106 = vst [vmem:[#allocation3] sm:$0xff] 0.0
      %107 = vst [vmem:[#allocation3 + $0x8] sm:$0xff] 0.0
      %108 = vst [vmem:[#allocation3 + $0x10] sm:$0xff] 0.0
      %109 = vst [vmem:[#allocation3 + $0x18] sm:$0xff] 0.0
    $region53: #{tpu_custom_call.1} parent=1 // pred_fallthru
      _
    %v110 = vld [vmem:[#allocation4] sm:$0xff]
    %v111 = vld [vmem:[#allocation4 + $0x8] sm:$0xff]
    %v112 = vld [vmem:[#allocation4 + $0x10] sm:$0xff]
    %v113 = vld [vmem:[#allocation4 + $0x18] sm:$0xff]
    %v114 = vld [vmem:[#allocation7] sm:$0xff]
    %v115 = vld [vmem:[#allocation7 + $0x8] sm:$0xff]
    %v116 = vld [vmem:[#allocation7 + $0x10] sm:$0xff]
    %v117 = vld [vmem:[#allocation7 + $0x18] sm:$0xff]
    %v118 = vadd.f32 %v110, %v114
    %v119 = vadd.f32 %v111, %v115
    %v120 = vadd.f32 %v112, %v116
    %v121 = vadd.f32 %v113, %v117
    %v122 = vld [vmem:[#allocation9] sm:$0xff]
    %v123 = vld [vmem:[#allocation9 + $0x8] sm:$0xff]
    %v124 = vld [vmem:[#allocation9 + $0x10] sm:$0xff]
    %v125 = vld [vmem:[#allocation9 + $0x18] sm:$0xff]
    %v126 = vld [vmem:[#allocation9 + $0x20] sm:$0xff]
    %v127 = vld [vmem:[#allocation9 + $0x28] sm:$0xff]
    %v128 = vld [vmem:[#allocation9 + $0x30] sm:$0xff]
    %v129 = vld [vmem:[#allocation9 + $0x38] sm:$0xff]
    %v130 = vld [vmem:[#allocation9 + $0x40] sm:$0xff]
    %v131 = vld [vmem:[#allocation9 + $0x48] sm:$0xff]
    %v132 = vld [vmem:[#allocation9 + $0x50] sm:$0xff]
    %v133 = vld [vmem:[#allocation9 + $0x58] sm:$0xff]
    %v134 = vld [vmem:[#allocation9 + $0x60] sm:$0xff]
    %v135 = vld [vmem:[#allocation9 + $0x68] sm:$0xff]
    %v136 = vld [vmem:[#allocation9 + $0x70] sm:$0xff]
    %v137 = vld [vmem:[#allocation9 + $0x78] sm:$0xff]
    %138 = vmatprep.subr.mxu0 0.0
    %139 = vmatpush1.msra.mxu0 %v122
    %140 = vmatprep.subr.mxu0 0.0
    %141 = vmatpush1.msra.mxu0 %v123
    %142 = vmatprep.subr.mxu0 0.0
    %143 = vmatpush1.msra.mxu0 %v124
    %144 = vmatprep.subr.mxu0 0.0
    %145 = vmatpush1.msra.mxu0 %v125
    %146 = vmatprep.subr.mxu0 0.0
    %147 = vmatpush1.msra.mxu0 %v126
    %148 = vmatprep.subr.mxu0 0.0
    %149 = vmatpush1.msra.mxu0 %v127
    %150 = vmatprep.subr.mxu0 0.0
    %151 = vmatpush1.msra.mxu0 %v128
    %152 = vmatprep.subr.mxu0 0.0
    %153 = vmatpush1.msra.mxu0 %v129
    %154 = vmatprep.subr.mxu0 0.0
    %155 = vmatpush1.msra.mxu0 %v130
    %156 = vmatprep.subr.mxu0 0.0
    %157 = vmatpush1.msra.mxu0 %v131
    %158 = vmatprep.subr.mxu0 0.0
    %159 = vmatpush1.msra.mxu0 %v132
    %160 = vmatprep.subr.mxu0 0.0
    %161 = vmatpush1.msra.mxu0 %v133
    %162 = vmatprep.subr.mxu0 0.0
    %163 = vmatpush1.msra.mxu0 %v134
    %164 = vmatprep.subr.mxu0 0.0
    %165 = vmatpush1.msra.mxu0 %v135
    %166 = vmatprep.subr.mxu0 0.0
    %167 = vmatpush1.msra.mxu0 %v136
    %168 = vmatprep.subr.mxu0 0.0
    %169 = vmatpush1.msra.mxu0 %v137
    %170 = vmatprep.subr.mxu0 0.0
    %171 = vmatpush1.msra.mxu0 0.0
    %172 = vmatprep.subr.mxu0 0.0
    %173 = vmatpush1.msra.mxu0 0.0
    %174 = vmatprep.subr.mxu0 0.0
    %175 = vmatpush1.msra.mxu0 0.0
    %176 = vmatprep.subr.mxu0 0.0
    %177 = vmatpush1.msra.mxu0 0.0
    %178 = vmatprep.subr.mxu0 0.0
    %179 = vmatpush1.msra.mxu0 0.0
    %180 = vmatprep.subr.mxu0 0.0
    %181 = vmatpush1.msra.mxu0 0.0
    %182 = vmatprep.subr.mxu0 0.0
    %183 = vmatpush1.msra.mxu0 0.0
    %184 = vmatprep.subr.mxu0 0.0
    %185 = vmatpush1.msra.mxu0 0.0
    %186 = vmatprep.subr.mxu0 0.0
    %187 = vmatpush1.msra.mxu0 0.0
    %188 = vmatprep.subr.mxu0 0.0
    %189 = vmatpush1.msra.mxu0 0.0
    %190 = vmatprep.subr.mxu0 0.0
    %191 = vmatpush1.msra.mxu0 0.0
    %192 = vmatprep.subr.mxu0 0.0
    %193 = vmatpush1.msra.mxu0 0.0
    %194 = vmatprep.subr.mxu0 0.0
    %195 = vmatpush1.msra.mxu0 0.0
    %196 = vmatprep.subr.mxu0 0.0
    %197 = vmatpush1.msra.mxu0 0.0
    %198 = vmatprep.subr.mxu0 0.0
    %199 = vmatpush1.msra.mxu0 0.0
    %200 = vmatprep.subr.mxu0 0.0
    %201 = vmatpush1.msra.mxu0 0.0
    %202 = vmatprep.mubr.f32.mxu0 0.0
    %203 = vmatmul.mubr.f32.gmra.mrb[0].mxu0 %v118
    %v204 = vpop.f32.mrb[0].mxu0
    %v205 = vadd.f32 0.0, %v204
    %v206 = vpop.f32.mrb[0].mxu0
    %207 = vmatprep.mubr.f32.mxu0 0.0
    %208 = vmatmul.mubr.f32.gmra.mrb[0].mxu0 %v119
    %v209 = vpop.f32.mrb[0].mxu0
    %v210 = vadd.f32 0.0, %v209
    %v211 = vpop.f32.mrb[0].mxu0
    %212 = vmatprep.mubr.f32.mxu0 0.0
    %213 = vmatmul.mubr.f32.gmra.mrb[0].mxu0 %v120
    %v214 = vpop.f32.mrb[0].mxu0
    %v215 = vadd.f32 0.0, %v214
    %v216 = vpop.f32.mrb[0].mxu0
    %217 = vmatprep.mubr.f32.mxu0 0.0
    %218 = vmatmul.mubr.f32.gmra.mrb[0].mxu0 %v121
    %v219 = vpop.f32.mrb[0].mxu0
    %v220 = vadd.f32 0.0, %v219
    %v221 = vpop.f32.mrb[0].mxu0
    %222 = vdwg.mxu0
    %v223 = vld [vmem:[#allocation10] sm:$0xff]
    %v224 = vld [vmem:[#allocation10 + $0x8] sm:$0xff]
    %v225 = vld [vmem:[#allocation10 + $0x10] sm:$0xff]
    %v226 = vld [vmem:[#allocation10 + $0x18] sm:$0xff]
    %v227 = vld [vmem:[#allocation10 + $0x20] sm:$0xff]
    %v228 = vld [vmem:[#allocation10 + $0x28] sm:$0xff]
    %v229 = vld [vmem:[#allocation10 + $0x30] sm:$0xff]
    %v230 = vld [vmem:[#allocation10 + $0x38] sm:$0xff]
    %v231 = vld [vmem:[#allocation10 + $0x40] sm:$0xff]
    %v232 = vld [vmem:[#allocation10 + $0x48] sm:$0xff]
    %v233 = vld [vmem:[#allocation10 + $0x50] sm:$0xff]
    %v234 = vld [vmem:[#allocation10 + $0x58] sm:$0xff]
    %v235 = vld [vmem:[#allocation10 + $0x60] sm:$0xff]
    %v236 = vld [vmem:[#allocation10 + $0x68] sm:$0xff]
    %v237 = vld [vmem:[#allocation10 + $0x70] sm:$0xff]
    %v238 = vld [vmem:[#allocation10 + $0x78] sm:$0xff]
    %239 = vmatprep.subr.mxu0 0.0
    %240 = vmatpush1.msra.mxu0 %v223
    %241 = vmatprep.subr.mxu0 0.0
    %242 = vmatpush1.msra.mxu0 %v224
    %243 = vmatprep.subr.mxu0 0.0
    %244 = vmatpush1.msra.mxu0 %v225
    %245 = vmatprep.subr.mxu0 0.0
    %246 = vmatpush1.msra.mxu0 %v226
    %247 = vmatprep.subr.mxu0 0.0
    %248 = vmatpush1.msra.mxu0 %v227
    %249 = vmatprep.subr.mxu0 0.0
    %250 = vmatpush1.msra.mxu0 %v228
    %251 = vmatprep.subr.mxu0 0.0
    %252 = vmatpush1.msra.mxu0 %v229
    %253 = vmatprep.subr.mxu0 0.0
    %254 = vmatpush1.msra.mxu0 %v230
    %255 = vmatprep.subr.mxu0 0.0
    %256 = vmatpush1.msra.mxu0 %v231
    %257 = vmatprep.subr.mxu0 0.0
    %258 = vmatpush1.msra.mxu0 %v232
    %259 = vmatprep.subr.mxu0 0.0
    %260 = vmatpush1.msra.mxu0 %v233
    %261 = vmatprep.subr.mxu0 0.0
    %262 = vmatpush1.msra.mxu0 %v234
    %263 = vmatprep.subr.mxu0 0.0
    %264 = vmatpush1.msra.mxu0 %v235
    %265 = vmatprep.subr.mxu0 0.0
    %266 = vmatpush1.msra.mxu0 %v236
    %267 = vmatprep.subr.mxu0 0.0
    %268 = vmatpush1.msra.mxu0 %v237
    %269 = vmatprep.subr.mxu0 0.0
    %270 = vmatpush1.msra.mxu0 %v238
    %271 = vmatprep.subr.mxu0 0.0
    %272 = vmatpush1.msra.mxu0 0.0
    %273 = vmatprep.subr.mxu0 0.0
    %274 = vmatpush1.msra.mxu0 0.0
    %275 = vmatprep.subr.mxu0 0.0
    %276 = vmatpush1.msra.mxu0 0.0
    %277 = vmatprep.subr.mxu0 0.0
    %278 = vmatpush1.msra.mxu0 0.0
    %279 = vmatprep.subr.mxu0 0.0
    %280 = vmatpush1.msra.mxu0 0.0
    %281 = vmatprep.subr.mxu0 0.0
    %282 = vmatpush1.msra.mxu0 0.0
    %283 = vmatprep.subr.mxu0 0.0
    %284 = vmatpush1.msra.mxu0 0.0
    %285 = vmatprep.subr.mxu0 0.0
    %286 = vmatpush1.msra.mxu0 0.0
    %287 = vmatprep.subr.mxu0 0.0
    %288 = vmatpush1.msra.mxu0 0.0
    %289 = vmatprep.subr.mxu0 0.0
    %290 = vmatpush1.msra.mxu0 0.0
    %291 = vmatprep.subr.mxu0 0.0
    %292 = vmatpush1.msra.mxu0 0.0
    %293 = vmatprep.subr.mxu0 0.0
    %294 = vmatpush1.msra.mxu0 0.0
    %295 = vmatprep.subr.mxu0 0.0
    %296 = vmatpush1.msra.mxu0 0.0
    %297 = vmatprep.subr.mxu0 0.0
    %298 = vmatpush1.msra.mxu0 0.0
    %299 = vmatprep.subr.mxu0 0.0
    %300 = vmatpush1.msra.mxu0 0.0
    %301 = vmatprep.subr.mxu0 0.0
    %302 = vmatpush1.msra.mxu0 0.0
    %303 = vmatprep.mubr.f32.mxu0 0.0
    %304 = vmatmul.mubr.f32.gmra.mrb[0].mxu0 %v114
    %v305 = vpop.f32.mrb[0].mxu0
    %v306 = vadd.f32 0.0, %v305
    %v307 = vpop.f32.mrb[0].mxu0
    %308 = vmatprep.mubr.f32.mxu0 0.0
    %309 = vmatmul.mubr.f32.gmra.mrb[0].mxu0 %v115
    %v310 = vpop.f32.mrb[0].mxu0
    %v311 = vadd.f32 0.0, %v310
    %v312 = vpop.f32.mrb[0].mxu0
    %313 = vmatprep.mubr.f32.mxu0 0.0
    %314 = vmatmul.mubr.f32.gmra.mrb[0].mxu0 %v116
    %v315 = vpop.f32.mrb[0].mxu0
    %v316 = vadd.f32 0.0, %v315
    %v317 = vpop.f32.mrb[0].mxu0
    %318 = vmatprep.mubr.f32.mxu0 0.0
    %319 = vmatmul.mubr.f32.gmra.mrb[0].mxu0 %v117
    %v320 = vpop.f32.mrb[0].mxu0
    %v321 = vadd.f32 0.0, %v320
    %v322 = vpop.f32.mrb[0].mxu0
    %323 = vdwg.mxu0
    %v324 = vld [vmem:[#allocation12] sm:$0xff]
    %v325 = vld [vmem:[#allocation12 + $0x8] sm:$0xff]
    %v326 = vld [vmem:[#allocation12 + $0x10] sm:$0xff]
    %v327 = vld [vmem:[#allocation12 + $0x18] sm:$0xff]
    %v328 = vld [vmem:[#allocation12 + $0x20] sm:$0xff]
    %v329 = vld [vmem:[#allocation12 + $0x28] sm:$0xff]
    %v330 = vld [vmem:[#allocation12 + $0x30] sm:$0xff]
    %v331 = vld [vmem:[#allocation12 + $0x38] sm:$0xff]
    %v332 = vld [vmem:[#allocation12 + $0x40] sm:$0xff]
    %v333 = vld [vmem:[#allocation12 + $0x48] sm:$0xff]
    %v334 = vld [vmem:[#allocation12 + $0x50] sm:$0xff]
    %v335 = vld [vmem:[#allocation12 + $0x58] sm:$0xff]
    %v336 = vld [vmem:[#allocation12 + $0x60] sm:$0xff]
    %v337 = vld [vmem:[#allocation12 + $0x68] sm:$0xff]
    %v338 = vld [vmem:[#allocation12 + $0x70] sm:$0xff]
    %v339 = vld [vmem:[#allocation12 + $0x78] sm:$0xff]
    %340 = vmatprep.subr.mxu0 0.0
    %341 = vmatpush1.msra.mxu0 %v324
    %342 = vmatprep.subr.mxu0 0.0
    %343 = vmatpush1.msra.mxu0 %v325
    %344 = vmatprep.subr.mxu0 0.0
    %345 = vmatpush1.msra.mxu0 %v326
    %346 = vmatprep.subr.mxu0 0.0
    %347 = vmatpush1.msra.mxu0 %v327
    %348 = vmatprep.subr.mxu0 0.0
    %349 = vmatpush1.msra.mxu0 %v328
    %350 = vmatprep.subr.mxu0 0.0
    %351 = vmatpush1.msra.mxu0 %v329
    %352 = vmatprep.subr.mxu0 0.0
    %353 = vmatpush1.msra.mxu0 %v330
    %354 = vmatprep.subr.mxu0 0.0
    %355 = vmatpush1.msra.mxu0 %v331
    %356 = vmatprep.subr.mxu0 0.0
    %357 = vmatpush1.msra.mxu0 %v332
    %358 = vmatprep.subr.mxu0 0.0
    %359 = vmatpush1.msra.mxu0 %v333
    %360 = vmatprep.subr.mxu0 0.0
    %361 = vmatpush1.msra.mxu0 %v334
    %362 = vmatprep.subr.mxu0 0.0
    %363 = vmatpush1.msra.mxu0 %v335
    %364 = vmatprep.subr.mxu0 0.0
    %365 = vmatpush1.msra.mxu0 %v336
    %366 = vmatprep.subr.mxu0 0.0
    %367 = vmatpush1.msra.mxu0 %v337
    %368 = vmatprep.subr.mxu0 0.0
    %369 = vmatpush1.msra.mxu0 %v338
    %370 = vmatprep.subr.mxu0 0.0
    %371 = vmatpush1.msra.mxu0 %v339
    %372 = vmatprep.subr.mxu0 0.0
    %373 = vmatpush1.msra.mxu0 0.0
    %374 = vmatprep.subr.mxu0 0.0
    %375 = vmatpush1.msra.mxu0 0.0
    %376 = vmatprep.subr.mxu0 0.0
    %377 = vmatpush1.msra.mxu0 0.0
    %378 = vmatprep.subr.mxu0 0.0
    %379 = vmatpush1.msra.mxu0 0.0
    %380 = vmatprep.subr.mxu0 0.0
    %381 = vmatpush1.msra.mxu0 0.0
    %382 = vmatprep.subr.mxu0 0.0
    %383 = vmatpush1.msra.mxu0 0.0
    %384 = vmatprep.subr.mxu0 0.0
    %385 = vmatpush1.msra.mxu0 0.0
    %386 = vmatprep.subr.mxu0 0.0
    %387 = vmatpush1.msra.mxu0 0.0
    %388 = vmatprep.subr.mxu0 0.0
    %389 = vmatpush1.msra.mxu0 0.0
    %390 = vmatprep.subr.mxu0 0.0
    %391 = vmatpush1.msra.mxu0 0.0
    %392 = vmatprep.subr.mxu0 0.0
    %393 = vmatpush1.msra.mxu0 0.0
    %394 = vmatprep.subr.mxu0 0.0
    %395 = vmatpush1.msra.mxu0 0.0
    %396 = vmatprep.subr.mxu0 0.0
    %397 = vmatpush1.msra.mxu0 0.0
    %398 = vmatprep.subr.mxu0 0.0
    %399 = vmatpush1.msra.mxu0 0.0
    %400 = vmatprep.subr.mxu0 0.0
    %401 = vmatpush1.msra.mxu0 0.0
    %402 = vmatprep.subr.mxu0 0.0
    %403 = vmatpush1.msra.mxu0 0.0
    %404 = vmatprep.mubr.f32.mxu0 0.0
    %405 = vmatmul.mubr.f32.gmra.mrb[0].mxu0 %v110
    %v406 = vpop.f32.mrb[0].mxu0
    %v407 = vadd.f32 0.0, %v406
    %v408 = vpop.f32.mrb[0].mxu0
    %409 = vmatprep.mubr.f32.mxu0 0.0
    %410 = vmatmul.mubr.f32.gmra.mrb[0].mxu0 %v111
    %v411 = vpop.f32.mrb[0].mxu0
    %v412 = vadd.f32 0.0, %v411
    %v413 = vpop.f32.mrb[0].mxu0
    %414 = vmatprep.mubr.f32.mxu0 0.0
    %415 = vmatmul.mubr.f32.gmra.mrb[0].mxu0 %v112
    %v416 = vpop.f32.mrb[0].mxu0
    %v417 = vadd.f32 0.0, %v416
    %v418 = vpop.f32.mrb[0].mxu0
    %419 = vmatprep.mubr.f32.mxu0 0.0
    %420 = vmatmul.mubr.f32.gmra.mrb[0].mxu0 %v113
    %v421 = vpop.f32.mrb[0].mxu0
    %v422 = vadd.f32 0.0, %v421
    %v423 = vpop.f32.mrb[0].mxu0
    %424 = vdwg.mxu0
    %v425 = vld [vmem:[#allocation2] sm:$0xff]
    %v426 = vld [vmem:[#allocation2 + $0x8] sm:$0xff]
    %v427 = vld [vmem:[#allocation2 + $0x10] sm:$0xff]
    %v428 = vld [vmem:[#allocation2 + $0x18] sm:$0xff]
    %v429 = vsub.f32 %v205, %v306
    %v430 = vsub.f32 %v210, %v311
    %v431 = vsub.f32 %v215, %v316
    %v432 = vsub.f32 %v220, %v321
    %v433 = vadd.f32 %v425, %v429
    %v434 = vadd.f32 %v426, %v430
    %v435 = vadd.f32 %v427, %v431
    %v436 = vadd.f32 %v428, %v432
    %437 = vst [vmem:[#allocation2] sm:$0xff] %v433
    %438 = vst [vmem:[#allocation2 + $0x8] sm:$0xff] %v434
    %439 = vst [vmem:[#allocation2 + $0x10] sm:$0xff] %v435
    %440 = vst [vmem:[#allocation2 + $0x18] sm:$0xff] %v436
    %v441 = vld [vmem:[#allocation3] sm:$0xff]
    %v442 = vld [vmem:[#allocation3 + $0x8] sm:$0xff]
    %v443 = vld [vmem:[#allocation3 + $0x10] sm:$0xff]
    %v444 = vld [vmem:[#allocation3 + $0x18] sm:$0xff]
    %v445 = vadd.f32 %v205, %v407
    %v446 = vadd.f32 %v210, %v412
    %v447 = vadd.f32 %v215, %v417
    %v448 = vadd.f32 %v220, %v422
    %v449 = vadd.f32 %v441, %v445
    %v450 = vadd.f32 %v442, %v446
    %v451 = vadd.f32 %v443, %v447
    %v452 = vadd.f32 %v444, %v448
    %453 = vst [vmem:[#allocation3] sm:$0xff] %v449
    %454 = vst [vmem:[#allocation3 + $0x8] sm:$0xff] %v450
    %455 = vst [vmem:[#allocation3 + $0x10] sm:$0xff] %v451
    %456 = vst [vmem:[#allocation3 + $0x18] sm:$0xff] %v452
    // Predicated region
    $region54: #{tpu_custom_call.1} parent=1 // pred_check
      %p457 = pneg %p98
    $region55: #{tpu_custom_call.1} parent=1 // pred_check_branch
      %459 = sbr.rel (%p457) target = $region57
    $region56: #{tpu_custom_call.1} parent=1 // pred_region
      %v460 = vld [vmem:[#allocation2] sm:$0xff]
      %v461 = vld [vmem:[#allocation2 + $0x8] sm:$0xff]
      %v462 = vld [vmem:[#allocation2 + $0x10] sm:$0xff]
      %v463 = vld [vmem:[#allocation2 + $0x18] sm:$0xff]
      %v464 = vld [vmem:[%s5] sm:$0x1]
      %v466 = vlaneseq
      %v467 = vshrl.u32 %v466, 7
      %v468 = vsub.s32 0, %v467
      %v469 = vrot.slane %v464, %v468
      %v471 = vadd.f32 %v460, %v469
      %v472 = vadd.f32 %v461, %v469
      %v473 = vadd.f32 %v462, %v469
      %v474 = vadd.f32 %v463, %v469
      %475 = vst [vmem:[#allocation13] sm:$0xff] %v471
      %476 = vst [vmem:[#allocation13 + $0x8] sm:$0xff] %v472
      %477 = vst [vmem:[#allocation13 + $0x10] sm:$0xff] %v473
      %478 = vst [vmem:[#allocation13 + $0x18] sm:$0xff] %v474
      %v479 = vld [vmem:[#allocation3] sm:$0xff]
      %v480 = vld [vmem:[#allocation3 + $0x8] sm:$0xff]
      %v481 = vld [vmem:[#allocation3 + $0x10] sm:$0xff]
      %v482 = vld [vmem:[#allocation3 + $0x18] sm:$0xff]
      %v483 = vld [vmem:[%s6] sm:$0x1]
      %v485 = vlaneseq
      %v486 = vshrl.u32 %v485, 7
      %v487 = vsub.s32 0, %v486
      %v488 = vrot.slane %v483, %v487
      %v490 = vadd.f32 %v479, %v488
      %v491 = vadd.f32 %v480, %v488
      %v492 = vadd.f32 %v481, %v488
      %v493 = vadd.f32 %v482, %v488
      %494 = vst [vmem:[#allocation14] sm:$0xff] %v490
      %495 = vst [vmem:[#allocation14 + $0x8] sm:$0xff] %v491
      %496 = vst [vmem:[#allocation14 + $0x10] sm:$0xff] %v492
      %497 = vst [vmem:[#allocation14 + $0x18] sm:$0xff] %v493
    $region57: #{tpu_custom_call.1} parent=1 // pred_fallthru
      _
    // Predicated region
    $region58: #{tpu_custom_call.1} parent=1 // pred_check
      _
    $region59: #{tpu_custom_call.1} parent=1 // pred_check_branch
      %499 = sbr.rel (0) target = $region61
    $region60: #{tpu_custom_call.1} parent=1 // pred_region
      %s501 = ssub.s32 512, 512
      %502 = vsyncadd [#allocation6], %s501
      %s503 = sshll.u32 [#allocation13], 4
      %s504 = int_to_ptr.vmem [resolvable:$true] %s503
      %509 = dma.vmem_to_hbm [thread:$0]  %s504, 512, %s7, [#allocation6], 128, 128, 8
    $region61: #{tpu_custom_call.1} parent=1 // pred_fallthru
      _
    // Predicated region
    $region62: #{tpu_custom_call.1} parent=1 // pred_check
      _
    $region63: #{tpu_custom_call.1} parent=1 // pred_check_branch
      %511 = sbr.rel (0) target = $region65
    $region64: #{tpu_custom_call.1} parent=1 // pred_region
      %s513 = ssub.s32 512, 512
      %514 = vsyncadd [#allocation15], %s513
      %s515 = sshll.u32 [#allocation14], 4
      %s516 = int_to_ptr.vmem [resolvable:$true] %s515
      %521 = dma.vmem_to_hbm [thread:$0]  %s516, 512, %s8, [#allocation15], 128, 128, 8
    $region65: #{tpu_custom_call.1} parent=1 // pred_fallthru
      _
    // Predicated region
    $region66: #{tpu_custom_call.1} parent=1 // pred_check
      _
    $region67: #{tpu_custom_call.1} parent=1 // pred_check_branch
      %523 = sbr.rel (0) target = $region69
    $region68: #{tpu_custom_call.1} parent=1 // pred_region
      %524 = dma.done [#allocation6], 512
    $region69: #{tpu_custom_call.1} parent=1 // pred_fallthru
      _
    // Predicated region
    $region70: #{tpu_custom_call.1} parent=1 // pred_check
      _
    $region71: #{tpu_custom_call.1} parent=1 // pred_check_branch
      %526 = sbr.rel (0) target = $region73
    $region72: #{tpu_custom_call.1} parent=1 // pred_region
      %527 = dma.done [#allocation15], 512
    $region73: #{tpu_custom_call.1} parent=1 // pred_fallthru
      _
    %528 = vsyncpa [#allocation5], 1
    %529 = vsyncpa [#allocation8], 1
    %530 = vsyncpa [#allocation11], 1
    %531 = vsyncpa [#allocation6], 1
    %532 = vsyncpa [#allocation15], 1

</llo_original>
